<compile_context>
chip_gen: v7x
topology: tpu7x:2x2x1
jax: 0.10.0
libtpu: 0.0.40
codegen_flags: <defaults>
</compile_context>

<pallas_src>
import jax
import jax.numpy as jnp
from jax.experimental import pallas as pl
from jax.experimental.pallas import tpu as pltpu  # noqa: F401  (not needed at this size)

N = 200            # torch.linspace(-10, 10, 200).view(-1, 1)
INPUT_SIZE = 1
HIDDEN_SIZE = 10
OUTPUT_SIZE = 1

LANE = 128         # TPU lane width (fast axis)
SUBLANE = 8        # f32 sublane tile


def _round_up(x, m):
    return ((x + m - 1) // m) * m


def mlp_kernel(x_ref, p_ref, o_ref):
    # Lane-major layout:
    #   x_ref : (1, N_PAD)   samples on the lane axis (zero padded)
    #   p_ref : (H_PAD, 4)   packed params:
    #                          [:, 0] = w1 column (zero padded rows)
    #                          [:, 1] = b1 column
    #                          [:, 2] = w2 column (padded rows 0 -> contribute 0)
    #                          [0, 3] = b2 scalar
    #   o_ref : (1, N_PAD)   lane-dense output slab
    x = x_ref[...]                                   # (1, N_PAD)
    p = p_ref[...]                                   # (H_PAD, 4)
    w1 = p[:, 0:1]                                   # (H_PAD, 1)
    b1 = p[:, 1:2]                                   # (H_PAD, 1)
    w2 = p[:, 2:3]                                   # (H_PAD, 1)
    b2 = p[0:1, 3:4]                                 # (1, 1)

    # Layer 1 (Linear(1, H)): contraction K == 1 -> pure VPU broadcast
    # multiply-add (outer product), no MXU:  z[j, n] = w1[j] * x[n] + b1[j]
    z = x * w1 + b1                                  # (H_PAD, N_PAD)

    # Sigmoid via tanh: one EUP op, no divide, no exp overflow.
    h = 0.5 * jnp.tanh(0.5 * z) + 0.5                # (H_PAD, N_PAD)

    # Layer 2 (Linear(H, 1)): output width 1 -> cross-sublane reduction (XLU),
    # again no MXU:  y[n] = sum_j h[j, n] * w2[j] + b2
    y = jnp.sum(h * w2, axis=0, keepdims=True) + b2  # (1, N_PAD)

    o_ref[...] = y.astype(o_ref.dtype)


def pack_params(w1, b1, w2, b2):
    """Pack PyTorch-layout parameters into one zero-padded (H_PAD, 4) block.

    Run ONCE at parameter init (hoisted out of the per-call path).
    w1: (hidden, 1), b1: (hidden,), w2: (1, hidden), b2: (1,)
    """
    hidden = w1.shape[0]
    h_pad = _round_up(max(hidden, SUBLANE), SUBLANE)   # 10 -> 16
    dt = w1.dtype
    p = jnp.zeros((h_pad, 4), dt)
    p = p.at[:hidden, 0].set(w1[:, 0])
    p = p.at[:hidden, 1].set(b1)
    p = p.at[:hidden, 2].set(w2[0, :])
    p = p.at[0, 3].set(b2[0])
    return p


@jax.jit
def simple_mlp(x, params):
    """Jitted forward pass.

    x      : (N, 1) f32
    params : (H_PAD, 4) f32 packed block from pack_params()
    returns (N, 1) f32
    """
    n = x.shape[0]
    n_pad = _round_up(max(n, LANE), LANE)              # 200 -> 256
    h_pad = params.shape[0]
    dt = x.dtype

    # Lane-major x: one sublane row, samples on the lane axis, zero padded.
    x_lane = jnp.zeros((1, n_pad), dt).at[0, :n].set(x[:, 0])

    # Single grid point, full-array blocks (block shape == full dims satisfies
    # the (8,128) rule).  No multi-buffering / VMEM tuning needed at this size.
    full = lambda shape: pl.BlockSpec(shape, lambda: (0,) * len(shape))

    cost = pl.CostEstimate(
        flops=8 * h_pad * n_pad,
        transcendentals=h_pad * n_pad,
        bytes_accessed=2 * n_pad * 4 + h_pad * 4 * 4,
    )

    out = pl.pallas_call(
        mlp_kernel,
        out_shape=jax.ShapeDtypeStruct((1, n_pad), dt),
        grid=(),
        in_specs=[full(x_lane.shape), full(params.shape)],
        out_specs=full((1, n_pad)),
        cost_estimate=cost,
    )(x_lane, params)

    # Drop padded lanes, return PyTorch-shaped (N, 1) output (free under jit).
    return out[0, :n].reshape(n, 1)


def reference_mlp(x, w1, b1, w2, b2):
    # Pure-JAX reference with PyTorch Linear semantics: y = x @ W.T + b
    h = jax.nn.sigmoid(x @ w1.T + b1)
    return h @ w2.T + b2


if __name__ == "__main__":
    key = jax.random.PRNGKey(0)
    k1, k2, k3, k4 = jax.random.split(key, 4)

    # Deterministic parameter init (PyTorch Linear-style uniform bounds),
    # stored in PyTorch layout: weight is (out_features, in_features).
    bound1 = 1.0 / (INPUT_SIZE ** 0.5)
    bound2 = 1.0 / (HIDDEN_SIZE ** 0.5)
    w1 = jax.random.uniform(k1, (HIDDEN_SIZE, INPUT_SIZE), jnp.float32, -bound1, bound1)
    b1 = jax.random.uniform(k2, (HIDDEN_SIZE,), jnp.float32, -bound1, bound1)
    w2 = jax.random.uniform(k3, (OUTPUT_SIZE, HIDDEN_SIZE), jnp.float32, -bound2, bound2)
    b2 = jax.random.uniform(k4, (OUTPUT_SIZE,), jnp.float32, -bound2, bound2)

    # Pack / pad parameters ONCE (hoisted out of the forward hot path).
    params = jax.block_until_ready(pack_params(w1, b1, w2, b2))

    # Same input as the PyTorch script: x = linspace(-10, 10, 200).view(-1, 1)
    x = jnp.linspace(-10.0, 10.0, N, dtype=jnp.float32).reshape(-1, 1)

    out = jax.block_until_ready(simple_mlp(x, params))
    ref = reference_mlp(x, w1, b1, w2, b2)

    assert out.shape == (N, OUTPUT_SIZE)
    assert jnp.allclose(out, ref, atol=1e-5, rtol=1e-5)

    print("KERNEL_OK")
</pallas_src>

<mosaic_0001>
module attributes {stable_mosaic.version = 11 : i64} {
  func.func @mlp_kernel(%arg0: memref<1x256xf32, #tpu.memory_space<vmem>>, %arg1: memref<16x4xf32, #tpu.memory_space<vmem>>, %arg2: memref<1x256xf32, #tpu.memory_space<vmem>>) attributes {dimension_semantics = [], scalar_prefetch = 0 : i64, scratch_operands = 0 : i64, tpu.core_type = #tpu.core_type<tc>} {
    %c0 = arith.constant 0 : index
    %c0_0 = arith.constant 0 : index
    %0 = vector.load %arg0[%c0, %c0_0] : memref<1x256xf32, #tpu.memory_space<vmem>>, vector<1x256xf32>
    %c0_1 = arith.constant 0 : index
    %c0_2 = arith.constant 0 : index
    %1 = vector.load %arg1[%c0_1, %c0_2] : memref<16x4xf32, #tpu.memory_space<vmem>>, vector<16x4xf32>
    %2 = vector.extract_strided_slice %1 {offsets = [0, 0], sizes = [16, 1], strides = [1, 1]} : vector<16x4xf32> to vector<16x1xf32>
    %3 = vector.extract_strided_slice %1 {offsets = [0, 1], sizes = [16, 1], strides = [1, 1]} : vector<16x4xf32> to vector<16x1xf32>
    %4 = vector.extract_strided_slice %1 {offsets = [0, 2], sizes = [16, 1], strides = [1, 1]} : vector<16x4xf32> to vector<16x1xf32>
    %5 = vector.extract_strided_slice %1 {offsets = [0, 3], sizes = [1, 1], strides = [1, 1]} : vector<16x4xf32> to vector<1x1xf32>
    %6 = vector.broadcast %0 : vector<1x256xf32> to vector<16x256xf32>
    %7 = vector.broadcast %2 : vector<16x1xf32> to vector<16x256xf32>
    %8 = arith.mulf %6, %7 : vector<16x256xf32>
    %9 = vector.broadcast %3 : vector<16x1xf32> to vector<16x256xf32>
    %10 = arith.addf %8, %9 : vector<16x256xf32>
    %cst = arith.constant 5.000000e-01 : f32
    %11 = vector.broadcast %cst : f32 to vector<16x256xf32>
    %12 = arith.mulf %11, %10 : vector<16x256xf32>
    %13 = math.tanh %12 : vector<16x256xf32>
    %cst_3 = arith.constant 5.000000e-01 : f32
    %14 = vector.broadcast %cst_3 : f32 to vector<16x256xf32>
    %15 = arith.mulf %14, %13 : vector<16x256xf32>
    %cst_4 = arith.constant 5.000000e-01 : f32
    %16 = vector.broadcast %cst_4 : f32 to vector<16x256xf32>
    %17 = arith.addf %15, %16 : vector<16x256xf32>
    %18 = vector.broadcast %4 : vector<16x1xf32> to vector<16x256xf32>
    %19 = arith.mulf %17, %18 : vector<16x256xf32>
    %cst_5 = arith.constant dense<0.000000e+00> : vector<256xf32>
    %20 = vector.multi_reduction <add>, %19, %cst_5 [0] : vector<16x256xf32> to vector<256xf32>
    %21 = vector.shape_cast %20 : vector<256xf32> to vector<1x256xf32>
    %22 = vector.broadcast %5 : vector<1x1xf32> to vector<1x256xf32>
    %23 = arith.addf %21, %22 : vector<1x256xf32>
    %c0_6 = arith.constant 0 : index
    %c0_7 = arith.constant 0 : index
    %24 = vector.load %arg2[%c0_6, %c0_7] : memref<1x256xf32, #tpu.memory_space<vmem>>, vector<1x256xf32>
    tpu.vector_store %arg2[%c0_6, %c0_7], %23 {strides = array<i32>} : memref<1x256xf32, #tpu.memory_space<vmem>>, vector<1x256xf32>,
    return
  }
}

</mosaic_0001>

<llo_original>
// kernel: simple_mlp.1
$region0: #{simple_mlp.1}
  #allocation0 [shape = 'u32[]', space=smem, size = 0x4, offset = 0x4, fixed_abs, tag = 'smem constant byte address 0x4 - core index']
  #allocation1 [shape = 'u32[144,128]{1,0:T(1,128)}', space=vmem, size = 0x12000, scoped, tag = 'internal scratch']
  %s0 = inlined_call_operand.vmem [shape: f32[1,256], index: 0, kind: input, shape index: {}]
  %s1 = inlined_call_operand.vmem [shape: f32[16,4], index: 1, kind: input, shape index: {}]
  %s2 = inlined_call_operand.vmem [shape: f32[1,256], index: 2, kind: output, shape index: {}]
  %s3 = sld [smem:[#allocation0]]
  $region18: #{simple_mlp.1} parent=0
    _
  %s5 = ssub.s32 1, %s3
  %s6 = scalar_select 0, %s5, %s3
  // Predicated region
  $region2: #{simple_mlp.1} parent=0 // pred_check
    _
  $region3: #{simple_mlp.1} parent=0 // pred_check_branch
    %8 = sbr.rel (0) target = $region5
  $region4: #{simple_mlp.1} parent=0 // pred_region
    _
  $region5: #{simple_mlp.1} parent=0 // pred_fallthru
    _
  // Predicated region
  $region6: #{simple_mlp.1} parent=0 // pred_check
    _
  $region7: #{simple_mlp.1} parent=0 // pred_check_branch
    %10 = sbr.rel (0) target = $region9
  $region8: #{simple_mlp.1} parent=0 // pred_region
    _
  $region9: #{simple_mlp.1} parent=0 // pred_fallthru
    _
  %v11 = vld [vmem:[%s0] sm:$0x3]
  %v12 = vld [vmem:[%s1] sm:$0xff]
  %v13 = vld [vmem:[%s1 + $0x8] sm:$0xff]
  %v15 = vlaneseq
  %v16 = vshrl.u32 %v15, 7
  %v17 = vsub.s32 0, %v16
  %v18 = vrot.slane %v11, %v17
  %v19 = vlaneseq
  %v20 = vshrl.u32 %v19, 7
  %v21 = vsub.s32 1, %v20
  %v22 = vrot.slane %v11, %v21
  %26 = vset.pattern.permute.xlu0 0
  %27 = vperm.xlu0 %26, %v12
  %v28 = vpop.permute.xlu0 %27
  %31 = vset.pattern.permute.xlu0 0
  %32 = vperm.xlu0 %31, %v13
  %v33 = vpop.permute.xlu0 %32
  %v35 = vmul.f32 %v18, %v28
  %v36 = vmul.f32 %v22, %v28
  %v37 = vmul.f32 %v18, %v33
  %v38 = vmul.f32 %v22, %v33
  %39 = vset.pattern.permute.xlu0 1
  %40 = vperm.xlu0 %39, %v12
  %v41 = vpop.permute.xlu0 %40
  %43 = vset.pattern.permute.xlu0 1
  %44 = vperm.xlu0 %43, %v13
  %v45 = vpop.permute.xlu0 %44
  %v47 = vadd.f32 %v35, %v41
  %v48 = vadd.f32 %v36, %v41
  %v49 = vadd.f32 %v37, %v45
  %v50 = vadd.f32 %v38, %v45
  %v51 = vmul.f32 %v47, 0.5
  %v52 = vmul.f32 %v48, 0.5
  %v53 = vmul.f32 %v49, 0.5
  %v54 = vmul.f32 %v50, 0.5
  %v55 = vtanh.pop %v51
  %v56 = vtanh.pop %v52
  %v57 = vtanh.pop %v53
  %v58 = vtanh.pop %v54
  %v59 = vmul.f32 %v55, 0.5
  %v60 = vmul.f32 %v56, 0.5
  %v61 = vmul.f32 %v57, 0.5
  %v62 = vmul.f32 %v58, 0.5
  %v63 = vadd.f32 %v59, 0.5
  %v64 = vadd.f32 %v60, 0.5
  %v65 = vadd.f32 %v61, 0.5
  %v66 = vadd.f32 %v62, 0.5
  %67 = vset.pattern.permute.xlu0 2
  %68 = vperm.xlu0 %67, %v12
  %v69 = vpop.permute.xlu0 %68
  %71 = vset.pattern.permute.xlu0 2
  %72 = vperm.xlu0 %71, %v13
  %v73 = vpop.permute.xlu0 %72
  %v75 = vmul.f32 %v63, %v69
  %v76 = vmul.f32 %v64, %v69
  %v77 = vmul.f32 %v65, %v73
  %v78 = vmul.f32 %v66, %v73
  %v79 = vadd.f32 %v75, %v77
  %v80 = vrot.slane %v79, 4
  %v81 = vadd.f32 %v79, %v80
  %v82 = vrot.slane %v81, 2
  %v83 = vadd.f32 %v81, %v82
  %v84 = vrot.slane %v83, 1
  %v85 = vadd.f32 %v83, %v84
  %v86 = vadd.f32 %v76, %v78
  %v87 = vrot.slane %v86, 4
  %v88 = vadd.f32 %v86, %v87
  %v89 = vrot.slane %v88, 2
  %v90 = vadd.f32 %v88, %v89
  %v91 = vrot.slane %v90, 1
  %v92 = vadd.f32 %v90, %v91
  %93 = vset.pattern.permute.xlu0 3
  %94 = vperm.xlu0 %93, %v12
  %v95 = vpop.permute.xlu0 %94
  %v97 = vadd.f32 %v85, %v95
  %v98 = vadd.f32 %v92, %v95
  %v101 = vcombine.low %v97, %v98
  %v103 = vunpack.c.l.s4 1966171168
  %v104 = vunpack.c.0.s8 %v103
  %v105 = vlaneseq
  %v106 = vshrl.u32 %v105, 7
  %v107 = vsub.s32 %v104, %v106
  %v108 = vrot.slane %v101, %v107
  %v110 = vunpack.c.l.s4 1966171168
  %v111 = vunpack.c.0.s8 %v110
  %v112 = vlaneseq
  %v113 = vshrl.u32 %v112, 7
  %v114 = vsub.s32 %v111, %v113
  %v115 = vrot.slane %v108, %v114
  %v117 = vlaneseq
  %vm118 = vcmp.ge.s32.totalorder %v117, 0
  %vm119 = vcmp.lt.s32.totalorder %v117, 256
  %vm120 = vmand %vm118, %vm119
  %121 = vst.msk [vmem:[%s2] sm:$0x3] %vm120, %v115
  // Predicated region
  $region10: #{simple_mlp.1} parent=0 // pred_check
    _
  $region11: #{simple_mlp.1} parent=0 // pred_check_branch
    %123 = sbr.rel (0) target = $region13
  $region12: #{simple_mlp.1} parent=0 // pred_region
    _
  $region13: #{simple_mlp.1} parent=0 // pred_fallthru
    _
  // Predicated region
  $region14: #{simple_mlp.1} parent=0 // pred_check
    _
  $region15: #{simple_mlp.1} parent=0 // pred_check_branch
    %125 = sbr.rel (0) target = $region17
  $region16: #{simple_mlp.1} parent=0 // pred_region
    _
  $region17: #{simple_mlp.1} parent=0 // pred_fallthru
    _

</llo_original>
